<compile_context>
chip_gen: v7x
topology: tpu7x:2x2x1
jax: 0.10.0
libtpu: 0.0.40
codegen_flags: <defaults>
</compile_context>

<pallas_src>
import functools

import jax
import jax.numpy as jnp
from jax.experimental import pallas as pl
from jax.experimental.pallas import tpu as pltpu


def _round_up(a: int, b: int) -> int:
    return (a + b - 1) // b * b


# Conservative per-kernel tile budget that fits v5e/v6e (128 MiB VMEM) and
# v7x (64 MiB physical / 32 MiB scoped default), plus an explicit scoped limit.
_VMEM_TILE_BUDGET = 40 * 1024 * 1024
_VMEM_LIMIT_BYTES = 48 * 1024 * 1024


def _tile_vmem_bytes(tm, tn, tk, in_bytes, out_bytes, with_acc):
    vmem = 2 * (tm * tk + tk * tn) * in_bytes   # double-buffered x / W tiles
    vmem += 2 * 8 * tn * 4                      # bias tile (sublane-padded)
    vmem += 2 * tm * tn * out_bytes             # output tile
    if with_acc:
        vmem += tm * tn * 4                     # f32 accumulator scratch
    return vmem


def _proj_kernel(x_ref, w_ref, b_ref, o_ref):
    """Full-K path: one (tm, tn) output tile, computed and written once."""
    acc = jnp.dot(x_ref[...], w_ref[...], preferred_element_type=jnp.float32)
    o_ref[...] = (acc + b_ref[...]).astype(o_ref.dtype)


def _proj_kernel_ksplit(x_ref, w_ref, b_ref, o_ref, acc_ref):
    """K-reduction fallback for very large d_model; bias folded into init."""
    k = pl.program_id(2)

    @pl.when(k == 0)
    def _():
        acc_ref[...] = jnp.broadcast_to(b_ref[...], acc_ref.shape)

    acc_ref[...] += jnp.dot(
        x_ref[...], w_ref[...], preferred_element_type=jnp.float32
    )

    @pl.when(k == pl.num_programs(2) - 1)
    def _():
        o_ref[...] = acc_ref[...].astype(o_ref.dtype)


@functools.partial(jax.jit, static_argnames=("tm", "tn", "tk", "compute_dtype"))
def projection_layer(x, weight_t, bias, *, tm=None, tn=None, tk=None,
                     compute_dtype=jnp.bfloat16):
    """y = x @ weight_t + bias  with x:(B,S,D), weight_t:(D,V), bias:(V,)."""
    B, S, D = x.shape
    Dw, V = weight_t.shape
    assert D == Dw, "weight_t must have shape (d_model, vocab_size)"
    out_dtype = x.dtype

    M = B * S
    in_bytes = jnp.dtype(compute_dtype).itemsize
    out_bytes = jnp.dtype(out_dtype).itemsize

    # --- tile heuristics: big M tiles, lane-dense 128/256-aligned N tiles ---
    tm = tm if tm is not None else min(512, _round_up(M, 8))
    tn = tn if tn is not None else min(512, _round_up(V, 128))

    full_k = (
        (tk is None and
         _tile_vmem_bytes(tm, tn, D, in_bytes, out_bytes, False)
         <= _VMEM_TILE_BUDGET)
        or (tk is not None and tk >= D)
    )

    if full_k:
        tk_eff, D_pad = D, D
    else:
        if tk is not None:
            tk_eff = tk
        else:
            tk_eff = 2048
            while (tk_eff > 512 and
                   _tile_vmem_bytes(tm, tn, tk_eff, in_bytes, out_bytes, True)
                   > _VMEM_TILE_BUDGET):
                tk_eff //= 2
        D_pad = _round_up(D, tk_eff)

    M_pad = _round_up(M, tm)
    V_pad = _round_up(V, tn)

    # --- operand prep: bf16 cast for the MXU + zero-pad to tile multiples ---
    x2 = x.reshape(M, D).astype(compute_dtype)
    wt = weight_t.astype(compute_dtype)
    b2 = bias.astype(jnp.float32).reshape(1, V)

    if (M_pad, D_pad) != (M, D):
        x2 = jnp.pad(x2, ((0, M_pad - M), (0, D_pad - D)))
    if (D_pad, V_pad) != (D, V):
        wt = jnp.pad(wt, ((0, D_pad - D), (0, V_pad - V)))
    if V_pad != V:
        b2 = jnp.pad(b2, ((0, 0), (0, V_pad - V)))

    if full_k:
        grid = (M_pad // tm, V_pad // tn)
        grid_spec = pltpu.PrefetchScalarGridSpec(
            num_scalar_prefetch=0,
            grid=grid,
            in_specs=[
                pl.BlockSpec((tm, D_pad), lambda i, j: (i, 0)),   # x tile
                pl.BlockSpec((D_pad, tn), lambda i, j: (0, j)),   # W tile
                pl.BlockSpec((1, tn), lambda i, j: (0, j)),       # bias tile
            ],
            out_specs=pl.BlockSpec((tm, tn), lambda i, j: (i, j)),
        )
        kernel = _proj_kernel
        dim_sem = ("parallel", "parallel")
    else:
        grid = (M_pad // tm, V_pad // tn, D_pad // tk_eff)
        grid_spec = pltpu.PrefetchScalarGridSpec(
            num_scalar_prefetch=0,
            grid=grid,
            in_specs=[
                pl.BlockSpec((tm, tk_eff), lambda i, j, k: (i, k)),
                pl.BlockSpec((tk_eff, tn), lambda i, j, k: (k, j)),
                pl.BlockSpec((1, tn), lambda i, j, k: (0, j)),
            ],
            out_specs=pl.BlockSpec((tm, tn), lambda i, j, k: (i, j)),
            scratch_shapes=[pltpu.VMEM((tm, tn), jnp.float32)],
        )
        kernel = _proj_kernel_ksplit
        dim_sem = ("parallel", "parallel", "arbitrary")

    out = pl.pallas_call(
        kernel,
        out_shape=jax.ShapeDtypeStruct((M_pad, V_pad), out_dtype),
        grid_spec=grid_spec,
        compiler_params=pltpu.CompilerParams(
            dimension_semantics=dim_sem,
            vmem_limit_bytes=_VMEM_LIMIT_BYTES,
        ),
    )(x2, wt, b2)

    return out[:M, :V].reshape(B, S, V)


if __name__ == "__main__":
    # Small shapes consistent with the module: (batch, seq, d_model) -> vocab.
    batch, seq, d_model, vocab_size = 2, 8, 32, 128

    key = jax.random.PRNGKey(0)
    kx, kw, kb = jax.random.split(key, 3)

    x = jax.random.normal(kx, (batch, seq, d_model), dtype=jnp.float32)

    # Deterministic init matching nn.Linear's U(-1/sqrt(d_model), 1/sqrt(d_model)).
    bound = 1.0 / jnp.sqrt(jnp.float32(d_model))
    weight = jax.random.uniform(
        kw, (vocab_size, d_model), minval=-bound, maxval=bound, dtype=jnp.float32
    )  # PyTorch layout (V, D)
    bias = jax.random.uniform(
        kb, (vocab_size,), minval=-bound, maxval=bound, dtype=jnp.float32
    )

    weight_t = weight.T  # (D, V) for the kernel

    y = projection_layer(x, weight_t, bias)
    jax.block_until_ready(y)
    assert y.shape == (batch, seq, vocab_size)

    # Reference with the same bf16 operand quantization (f32 accumulate + bias).
    y_ref_bf16 = (
        jnp.dot(
            x.reshape(-1, d_model).astype(jnp.bfloat16),
            weight_t.astype(jnp.bfloat16),
            preferred_element_type=jnp.float32,
        )
        + bias
    ).reshape(batch, seq, vocab_size).astype(y.dtype)
    assert jnp.allclose(y, y_ref_bf16, atol=1e-3, rtol=1e-3)

    # Loose check against exact f32 nn.Linear math (bf16 cast error only).
    y_ref_f32 = jnp.einsum("bsd,vd->bsv", x, weight) + bias
    assert jnp.allclose(y, y_ref_f32, atol=5e-2, rtol=5e-2)

    print("KERNEL_OK")
</pallas_src>

<mosaic_0001>
module attributes {stable_mosaic.version = 11 : i64} {
  func.func @_proj_kernel(%arg0: i32, %arg1: i32, %arg2: memref<16x32xbf16, #tpu.memory_space<vmem>>, %arg3: memref<32x128xbf16, #tpu.memory_space<vmem>>, %arg4: memref<1x128xf32, #tpu.memory_space<vmem>>, %arg5: memref<16x128xf32, #tpu.memory_space<vmem>>) attributes {dimension_semantics = [#tpu.dimension_semantics<parallel>, #tpu.dimension_semantics<parallel>], iteration_bounds = array<i64: 1, 1>, scalar_prefetch = 0 : i64, scratch_operands = 0 : i64, tpu.core_type = #tpu.core_type<tc>, window_params = [{transform_indices = @transform_0, window_bounds = array<i64: 16, 32>}, {transform_indices = @transform_1, window_bounds = array<i64: 32, 128>}, {transform_indices = @transform_2, window_bounds = array<i64: 1, 128>}, {transform_indices = @transform_3, window_bounds = array<i64: 16, 128>}]} {
    %c0 = arith.constant 0 : index
    %c0_0 = arith.constant 0 : index
    %0 = vector.load %arg2[%c0, %c0_0] : memref<16x32xbf16, #tpu.memory_space<vmem>>, vector<16x32xbf16>
    %c0_1 = arith.constant 0 : index
    %c0_2 = arith.constant 0 : index
    %1 = vector.load %arg3[%c0_1, %c0_2] : memref<32x128xbf16, #tpu.memory_space<vmem>>, vector<32x128xbf16>
    %cst = arith.constant dense<0.000000e+00> : vector<16x128xf32>
    %2 = tpu.matmul %0, %1, %cst {dimension_numbers = #tpu.dot_dimension_numbers<[1], [0], [0], [1], [0, 0, 1, 1], [], []>} : vector<16x32xbf16>, vector<32x128xbf16>, vector<16x128xf32> -> vector<16x128xf32>
    %c0_3 = arith.constant 0 : index
    %c0_4 = arith.constant 0 : index
    %3 = vector.load %arg4[%c0_3, %c0_4] : memref<1x128xf32, #tpu.memory_space<vmem>>, vector<1x128xf32>
    %4 = vector.broadcast %3 : vector<1x128xf32> to vector<16x128xf32>
    %5 = arith.addf %2, %4 : vector<16x128xf32>
    %c0_5 = arith.constant 0 : index
    %c0_6 = arith.constant 0 : index
    %6 = vector.load %arg5[%c0_5, %c0_6] : memref<16x128xf32, #tpu.memory_space<vmem>>, vector<16x128xf32>
    tpu.vector_store %arg5[%c0_5, %c0_6], %5 {strides = array<i32>} : memref<16x128xf32, #tpu.memory_space<vmem>>, vector<16x128xf32>,
    return
  }
  func.func @transform_0(%arg0: i32, %arg1: i32) -> (i32, i32) {
    %c0_i32 = arith.constant 0 : i32
    %c0_i32_0 = arith.constant 0 : i32
    return %arg0, %c0_i32 : i32, i32
  }
  func.func @transform_1(%arg0: i32, %arg1: i32) -> (i32, i32) {
    %c0_i32 = arith.constant 0 : i32
    %c0_i32_0 = arith.constant 0 : i32
    return %c0_i32, %arg1 : i32, i32
  }
  func.func @transform_2(%arg0: i32, %arg1: i32) -> (i32, i32) {
    %c0_i32 = arith.constant 0 : i32
    %c0_i32_0 = arith.constant 0 : i32
    return %c0_i32, %arg1 : i32, i32
  }
  func.func @transform_3(%arg0: i32, %arg1: i32) -> (i32, i32) {
    %c0_i32 = arith.constant 0 : i32
    return %arg0, %arg1 : i32, i32
  }
}

</mosaic_0001>

<llo_original>
// kernel: projection_layer.1
$region0: #{projection_layer.1}
  #allocation0 [shape = 'u32[]', space=smem, size = 0x4, offset = 0x4, fixed_abs, tag = 'smem constant byte address 0x4 - core index']
  #allocation1 [shape = 'u32[144,128]{1,0:T(1,128)}', space=vmem, size = 0x12000, scoped, tag = 'internal scratch']
  %s0 = inlined_call_operand.vmem [shape: bf16[16,32], index: 0, kind: input, shape index: {}]
  %s1 = inlined_call_operand.vmem [shape: bf16[32,128], index: 1, kind: input, shape index: {}]
  %s2 = inlined_call_operand.vmem [shape: f32[1,128], index: 2, kind: input, shape index: {}]
  %s3 = inlined_call_operand.hbm [shape: f32[16,128], index: 3, kind: output, shape index: {}]
  %s4 = sld [smem:[#allocation0]]
  $region22: #{projection_layer.1} parent=0
    _
  %s6 = ssub.s32 1, %s4
  %s7 = scalar_select 0, %s6, %s4
  $region1: #{projection_layer.1} parent=0
    #allocation2 [shape = 'u8[8192]{0}', space=vmem, size = 0x2000, scoped, tag = 'output window, operand 0, single buffered']
    #allocation3 [shape = 's32[1]{0}', space=sflag, size = 0x4, scoped, tag = 'scoped memory for projection_layer.1']
    %8 = vsyncpa [#allocation3], 0
    // Predicated region
    $region2: #{projection_layer.1} parent=1 // pred_check
      _
    $region3: #{projection_layer.1} parent=1 // pred_check_branch
      %10 = sbr.rel (0) target = $region5
    $region4: #{projection_layer.1} parent=1 // pred_region
      _
    $region5: #{projection_layer.1} parent=1 // pred_fallthru
      _
    // Predicated region
    $region6: #{projection_layer.1} parent=1 // pred_check
      _
    $region7: #{projection_layer.1} parent=1 // pred_check_branch
      %12 = sbr.rel (0) target = $region9
    $region8: #{projection_layer.1} parent=1 // pred_region
      _
    $region9: #{projection_layer.1} parent=1 // pred_fallthru
      _
    // Predicated region
    $region10: #{projection_layer.1} parent=1 // pred_check
      _
    $region11: #{projection_layer.1} parent=1 // pred_check_branch
      %14 = sbr.rel (0) target = $region13
    $region12: #{projection_layer.1} parent=1 // pred_region
      _
    $region13: #{projection_layer.1} parent=1 // pred_fallthru
      _
    %v16 = vld [vmem:[%s0] sm:$0xf]
    %v17 = vld [vmem:[%s0 + $0x4] sm:$0xf]
    %v18 = vld [vmem:[%s1] sm:$0xf]
    %v19 = vld [vmem:[%s1 + $0x4] sm:$0xf]
    %v20 = vld [vmem:[%s1 + $0x8] sm:$0xf]
    %v21 = vld [vmem:[%s1 + $0xc] sm:$0xf]
    %v22 = vld [vmem:[%s2] sm:$0x1]
    %v24 = vlaneseq
    %v25 = vshrl.u32 %v24, 7
    %v26 = vsub.s32 0, %v25
    %v27 = vrot.slane %v22, %v26
    %v31 = vunpack.c.l.b16 %v16
    %v32 = vunpack.c.l.b16 %v17
    %v33 = vpack.c.b16 %v32, %v31
    %v38 = vunpack.c.l.b16 %v18
    %v39 = vunpack.c.l.b16 %v19
    %v40 = vunpack.c.l.b16 %v20
    %v41 = vunpack.c.l.b16 %v21
    %v42 = vpack.c.b16 %v39, %v38
    %v43 = vpack.c.b16 %v41, %v40
    %vm46 = vcmask 261120
    %v48 = vsel %vm46, %v33, 0
    %50 = vmatprep.subr.bf16.mxu0 0
    %51 = vmatpush1.bf16.msra.mxu0 %v42
    %52 = vmatprep.subr.bf16.mxu0 0
    %53 = vmatpush1.bf16.msra.mxu0 %v43
    %54 = vmatprep.subr.bf16.mxu0 0
    %55 = vmatpush1.bf16.msra.mxu0 0
    %56 = vmatprep.subr.bf16.mxu0 0
    %57 = vmatpush1.bf16.msra.mxu0 0
    %58 = vmatprep.subr.bf16.mxu0 0
    %59 = vmatpush1.bf16.msra.mxu0 0
    %60 = vmatprep.subr.bf16.mxu0 0
    %61 = vmatpush1.bf16.msra.mxu0 0
    %62 = vmatprep.subr.bf16.mxu0 0
    %63 = vmatpush1.bf16.msra.mxu0 0
    %64 = vmatprep.subr.bf16.mxu0 0
    %65 = vmatpush1.bf16.msra.mxu0 0
    %66 = vmatprep.subr.bf16.mxu0 0
    %67 = vmatpush1.bf16.msra.mxu0 0
    %68 = vmatprep.subr.bf16.mxu0 0
    %69 = vmatpush1.bf16.msra.mxu0 0
    %70 = vmatprep.subr.bf16.mxu0 0
    %71 = vmatpush1.bf16.msra.mxu0 0
    %72 = vmatprep.subr.bf16.mxu0 0
    %73 = vmatpush1.bf16.msra.mxu0 0
    %74 = vmatprep.subr.bf16.mxu0 0
    %75 = vmatpush1.bf16.msra.mxu0 0
    %76 = vmatprep.subr.bf16.mxu0 0
    %77 = vmatpush1.bf16.msra.mxu0 0
    %78 = vmatprep.subr.bf16.mxu0 0
    %79 = vmatpush1.bf16.msra.mxu0 0
    %80 = vmatprep.subr.bf16.mxu0 0
    %81 = vmatpush1.bf16.msra.mxu0 0
    %82 = vmatprep.mubr.bf16.mxu0 0
    %83 = vmatmul.mubr.bf16.gmra.mrb[0].mxu0 %v48
    %v84 = vpop.f32.mrb[0].mxu0
    %v85 = vadd.f32 %v27, %v84
    %v86 = vpop.f32.mrb[0].mxu0
    %v87 = vpop.f32.mrb[0].mxu0
    %v88 = vadd.f32 %v27, %v87
    %v89 = vpop.f32.mrb[0].mxu0
    %90 = vdwg.mxu0
    %91 = vst [vmem:[#allocation2] sm:$0xff] %v85
    %92 = vst [vmem:[#allocation2 + $0x8] sm:$0xff] %v88
    // Predicated region
    $region14: #{projection_layer.1} parent=1 // pred_check
      _
    $region15: #{projection_layer.1} parent=1 // pred_check_branch
      %94 = sbr.rel (0) target = $region17
    $region16: #{projection_layer.1} parent=1 // pred_region
      %s96 = ssub.s32 256, 256
      %97 = vsyncadd [#allocation3], %s96
      %s98 = sshll.u32 [#allocation2], 4
      %s99 = int_to_ptr.vmem [resolvable:$true] %s98
      %104 = dma.vmem_to_hbm [thread:$0]  %s99, 256, %s3, [#allocation3], 128, 128, 8
    $region17: #{projection_layer.1} parent=1 // pred_fallthru
      _
    // Predicated region
    $region18: #{projection_layer.1} parent=1 // pred_check
      _
    $region19: #{projection_layer.1} parent=1 // pred_check_branch
      %106 = sbr.rel (0) target = $region21
    $region20: #{projection_layer.1} parent=1 // pred_region
      %107 = dma.done [#allocation3], 256
    $region21: #{projection_layer.1} parent=1 // pred_fallthru
      _
    %108 = vsyncpa [#allocation3], 1

</llo_original>
